<compile_context>
chip_gen: v7x
topology: tpu7x:2x2x1
jax: 0.10.0
libtpu: 0.0.40
codegen_flags: <defaults>
</compile_context>

<pallas_src>
import jax
import jax.numpy as jnp
from jax.experimental import pallas as pl
from jax.experimental.pallas import tpu as pltpu


def rnn_kernel(xflat_ref, wih_ref, b_ref, whh_ref, wfc_ref, bfc_ref,
               out_ref, xproj_scr):
    """xflat_ref: (T*Bp, E) time-major flattened embeddings (batch padded to Bp).
    Computes h_T of the tanh recurrence and writes (Bp, Op) = h_T @ W_fc + b_fc."""
    TB, _ = xflat_ref.shape
    H = whh_ref.shape[0]
    Bp = out_ref.shape[0]
    T = TB // Bp

    # Phase 0: one large input projection over all T*Bp rows, bias folded in.
    xproj_scr[...] = (
        jnp.dot(xflat_ref[...], wih_ref[...], preferred_element_type=jnp.float32)
        + b_ref[...]
    )

    whh = whh_ref[...]  # resident across the unrolled recurrence

    def step(t, h):
        row = pl.multiple_of(t * Bp, Bp)           # tile-aligned sublane offset
        x_t = xproj_scr[pl.ds(row, Bp), :]         # (Bp, H)
        return jnp.tanh(
            x_t + jnp.dot(h, whh, preferred_element_type=jnp.float32)
        )

    h_last = jax.lax.fori_loop(
        0, T, step, jnp.zeros((Bp, H), jnp.float32), unroll=True
    )

    out_ref[...] = (
        jnp.dot(h_last, wfc_ref[...], preferred_element_type=jnp.float32)
        + bfc_ref[...]
    ).astype(out_ref.dtype)


def rnn_forward(tokens, emb_table, w_ih, w_hh, b, w_fc, b_fc):
    """tokens: (B, T) int32. Returns (B, num_outputs) float32.

    Weights are in right-multiply form: W_ih (E,H), W_hh (H,H), b (1,H)=b_ih+b_hh,
    W_fc (H,O), b_fc (1,O). Matches torch:
      h_t = tanh(x_t W_ih^T + b_ih + h_{t-1} W_hh^T + b_hh);  out = h_T W_fc^T + b_fc.
    """
    B, T = tokens.shape
    E = emb_table.shape[1]
    H = w_hh.shape[0]
    O = w_fc.shape[1]

    Bp = ((B + 7) // 8) * 8          # sublane-align the batch
    Op = ((O + 127) // 128) * 128    # lane-dense output (unmasked vst)

    # Embedding gather (data-dependent) -- plain-JAX glue, directly time-major.
    embed_tm = emb_table[tokens.T]                          # (T, B, E)
    if Bp != B:
        embed_tm = jnp.pad(embed_tm, ((0, 0), (0, Bp - B), (0, 0)))
    x_flat = embed_tm.reshape(T * Bp, E)                    # (T*Bp, E)

    w_fc_p = jnp.pad(w_fc, ((0, 0), (0, Op - O))) if Op != O else w_fc
    b_fc_p = jnp.pad(b_fc, ((0, 0), (0, Op - O))) if Op != O else b_fc

    out = pl.pallas_call(
        rnn_kernel,
        out_shape=jax.ShapeDtypeStruct((Bp, Op), jnp.float32),
        scratch_shapes=[pltpu.VMEM((T * Bp, H), jnp.float32)],
    )(x_flat, w_ih, b, w_hh, w_fc_p, b_fc_p)

    return out[:B, :O]


def reference_forward(tokens, emb_table, w_ih, w_hh, b, w_fc, b_fc):
    embed = emb_table[tokens]                  # (B, T, E)
    B, T, _ = embed.shape
    H = w_hh.shape[0]
    h = jnp.zeros((B, H), jnp.float32)
    for t in range(T):
        h = jnp.tanh(embed[:, t, :] @ w_ih + h @ w_hh + b)
    return h @ w_fc + b_fc


if __name__ == "__main__":
    # Module hyperparameters (small, consistent with the forward pass).
    vocab_size = 50
    embedding_size = 16
    hidden_size = 32
    num_outputs = 8
    B, T = 2, 8

    key = jax.random.PRNGKey(0)
    k = jax.random.split(key, 8)

    bound = 1.0 / jnp.sqrt(hidden_size)
    emb_table = jax.random.normal(k[0], (vocab_size, embedding_size), jnp.float32)
    # Pre-transposed weights (right-multiply form).
    w_ih = jax.random.uniform(k[1], (embedding_size, hidden_size), jnp.float32, -bound, bound)
    w_hh = jax.random.uniform(k[2], (hidden_size, hidden_size), jnp.float32, -bound, bound)
    b_ih = jax.random.uniform(k[3], (hidden_size,), jnp.float32, -bound, bound)
    b_hh = jax.random.uniform(k[4], (hidden_size,), jnp.float32, -bound, bound)
    b = (b_ih + b_hh).reshape(1, hidden_size)
    w_fc = jax.random.uniform(k[5], (hidden_size, num_outputs), jnp.float32, -bound, bound)
    b_fc = jax.random.uniform(k[6], (num_outputs,), jnp.float32, -bound, bound).reshape(1, num_outputs)

    tokens = jax.random.randint(k[7], (B, T), 0, vocab_size, jnp.int32)

    out = rnn_forward(tokens, emb_table, w_ih, w_hh, b, w_fc, b_fc)
    out = jax.block_until_ready(out)

    ref = reference_forward(tokens, emb_table, w_ih, w_hh, b, w_fc, b_fc)
    assert out.shape == (B, num_outputs)
    assert jnp.allclose(out, ref, atol=1e-5, rtol=1e-5), (out, ref)

    print("KERNEL_OK")
</pallas_src>

<mosaic_0001>
module attributes {stable_mosaic.version = 11 : i64} {
  func.func @rnn_kernel(%arg0: memref<64x16xf32, #tpu.memory_space<vmem>>, %arg1: memref<16x32xf32, #tpu.memory_space<vmem>>, %arg2: memref<1x32xf32, #tpu.memory_space<vmem>>, %arg3: memref<32x32xf32, #tpu.memory_space<vmem>>, %arg4: memref<32x128xf32, #tpu.memory_space<vmem>>, %arg5: memref<1x128xf32, #tpu.memory_space<vmem>>, %arg6: memref<8x128xf32, #tpu.memory_space<vmem>>, %arg7: memref<64x32xf32, #tpu.memory_space<vmem>>) attributes {dimension_semantics = [], scalar_prefetch = 0 : i64, scratch_operands = 1 : i64, tpu.core_type = #tpu.core_type<tc>} {
    %c0 = arith.constant 0 : index
    %c0_0 = arith.constant 0 : index
    %0 = vector.load %arg0[%c0, %c0_0] : memref<64x16xf32, #tpu.memory_space<vmem>>, vector<64x16xf32>
    %c0_1 = arith.constant 0 : index
    %c0_2 = arith.constant 0 : index
    %1 = vector.load %arg1[%c0_1, %c0_2] : memref<16x32xf32, #tpu.memory_space<vmem>>, vector<16x32xf32>
    %cst = arith.constant dense<0.000000e+00> : vector<64x32xf32>
    %2 = tpu.matmul %0, %1, %cst {dimension_numbers = #tpu.dot_dimension_numbers<[1], [0], [0], [1], [0, 0, 1, 1], [], []>} : vector<64x16xf32>, vector<16x32xf32>, vector<64x32xf32> -> vector<64x32xf32>
    %c0_3 = arith.constant 0 : index
    %c0_4 = arith.constant 0 : index
    %3 = vector.load %arg2[%c0_3, %c0_4] : memref<1x32xf32, #tpu.memory_space<vmem>>, vector<1x32xf32>
    %4 = vector.broadcast %3 : vector<1x32xf32> to vector<64x32xf32>
    %5 = arith.addf %2, %4 : vector<64x32xf32>
    %c0_5 = arith.constant 0 : index
    %c0_6 = arith.constant 0 : index
    %6 = vector.load %arg7[%c0_5, %c0_6] : memref<64x32xf32, #tpu.memory_space<vmem>>, vector<64x32xf32>
    tpu.vector_store %arg7[%c0_5, %c0_6], %5 {strides = array<i32>} : memref<64x32xf32, #tpu.memory_space<vmem>>, vector<64x32xf32>,
    %c0_7 = arith.constant 0 : index
    %c0_8 = arith.constant 0 : index
    %7 = vector.load %arg3[%c0_7, %c0_8] : memref<32x32xf32, #tpu.memory_space<vmem>>, vector<32x32xf32>
    %cst_9 = arith.constant 0.000000e+00 : f32
    %8 = vector.broadcast %cst_9 : f32 to vector<8x32xf32>
    %c0_i32 = arith.constant 0 : i32
    %c8_i32 = arith.constant 8 : i32
    %9 = arith.muli %c0_i32, %c8_i32 : i32
    %10 = tpu.assume_multiple %9, 8 : i32
    %11 = arith.index_cast %10 : i32 to index
    %c0_10 = arith.constant 0 : index
    %12 = vector.load %arg7[%11, %c0_10] : memref<64x32xf32, #tpu.memory_space<vmem>>, vector<8x32xf32>
    %cst_11 = arith.constant dense<0.000000e+00> : vector<8x32xf32>
    %13 = tpu.matmul %8, %7, %cst_11 {dimension_numbers = #tpu.dot_dimension_numbers<[1], [0], [0], [1], [0, 0, 1, 1], [], []>} : vector<8x32xf32>, vector<32x32xf32>, vector<8x32xf32> -> vector<8x32xf32>
    %14 = arith.addf %12, %13 : vector<8x32xf32>
    %15 = math.tanh %14 : vector<8x32xf32>
    %c1_i32 = arith.constant 1 : i32
    %c8_i32_12 = arith.constant 8 : i32
    %16 = arith.muli %c1_i32, %c8_i32_12 : i32
    %17 = tpu.assume_multiple %16, 8 : i32
    %18 = arith.index_cast %17 : i32 to index
    %c0_13 = arith.constant 0 : index
    %19 = vector.load %arg7[%18, %c0_13] : memref<64x32xf32, #tpu.memory_space<vmem>>, vector<8x32xf32>
    %cst_14 = arith.constant dense<0.000000e+00> : vector<8x32xf32>
    %20 = tpu.matmul %15, %7, %cst_14 {dimension_numbers = #tpu.dot_dimension_numbers<[1], [0], [0], [1], [0, 0, 1, 1], [], []>} : vector<8x32xf32>, vector<32x32xf32>, vector<8x32xf32> -> vector<8x32xf32>
    %21 = arith.addf %19, %20 : vector<8x32xf32>
    %22 = math.tanh %21 : vector<8x32xf32>
    %c2_i32 = arith.constant 2 : i32
    %c8_i32_15 = arith.constant 8 : i32
    %23 = arith.muli %c2_i32, %c8_i32_15 : i32
    %24 = tpu.assume_multiple %23, 8 : i32
    %25 = arith.index_cast %24 : i32 to index
    %c0_16 = arith.constant 0 : index
    %26 = vector.load %arg7[%25, %c0_16] : memref<64x32xf32, #tpu.memory_space<vmem>>, vector<8x32xf32>
    %cst_17 = arith.constant dense<0.000000e+00> : vector<8x32xf32>
    %27 = tpu.matmul %22, %7, %cst_17 {dimension_numbers = #tpu.dot_dimension_numbers<[1], [0], [0], [1], [0, 0, 1, 1], [], []>} : vector<8x32xf32>, vector<32x32xf32>, vector<8x32xf32> -> vector<8x32xf32>
    %28 = arith.addf %26, %27 : vector<8x32xf32>
    %29 = math.tanh %28 : vector<8x32xf32>
    %c3_i32 = arith.constant 3 : i32
    %c8_i32_18 = arith.constant 8 : i32
    %30 = arith.muli %c3_i32, %c8_i32_18 : i32
    %31 = tpu.assume_multiple %30, 8 : i32
    %32 = arith.index_cast %31 : i32 to index
    %c0_19 = arith.constant 0 : index
    %33 = vector.load %arg7[%32, %c0_19] : memref<64x32xf32, #tpu.memory_space<vmem>>, vector<8x32xf32>
    %cst_20 = arith.constant dense<0.000000e+00> : vector<8x32xf32>
    %34 = tpu.matmul %29, %7, %cst_20 {dimension_numbers = #tpu.dot_dimension_numbers<[1], [0], [0], [1], [0, 0, 1, 1], [], []>} : vector<8x32xf32>, vector<32x32xf32>, vector<8x32xf32> -> vector<8x32xf32>
    %35 = arith.addf %33, %34 : vector<8x32xf32>
    %36 = math.tanh %35 : vector<8x32xf32>
    %c4_i32 = arith.constant 4 : i32
    %c8_i32_21 = arith.constant 8 : i32
    %37 = arith.muli %c4_i32, %c8_i32_21 : i32
    %38 = tpu.assume_multiple %37, 8 : i32
    %39 = arith.index_cast %38 : i32 to index
    %c0_22 = arith.constant 0 : index
    %40 = vector.load %arg7[%39, %c0_22] : memref<64x32xf32, #tpu.memory_space<vmem>>, vector<8x32xf32>
    %cst_23 = arith.constant dense<0.000000e+00> : vector<8x32xf32>
    %41 = tpu.matmul %36, %7, %cst_23 {dimension_numbers = #tpu.dot_dimension_numbers<[1], [0], [0], [1], [0, 0, 1, 1], [], []>} : vector<8x32xf32>, vector<32x32xf32>, vector<8x32xf32> -> vector<8x32xf32>
    %42 = arith.addf %40, %41 : vector<8x32xf32>
    %43 = math.tanh %42 : vector<8x32xf32>
    %c5_i32 = arith.constant 5 : i32
    %c8_i32_24 = arith.constant 8 : i32
    %44 = arith.muli %c5_i32, %c8_i32_24 : i32
    %45 = tpu.assume_multiple %44, 8 : i32
    %46 = arith.index_cast %45 : i32 to index
    %c0_25 = arith.constant 0 : index
    %47 = vector.load %arg7[%46, %c0_25] : memref<64x32xf32, #tpu.memory_space<vmem>>, vector<8x32xf32>
    %cst_26 = arith.constant dense<0.000000e+00> : vector<8x32xf32>
    %48 = tpu.matmul %43, %7, %cst_26 {dimension_numbers = #tpu.dot_dimension_numbers<[1], [0], [0], [1], [0, 0, 1, 1], [], []>} : vector<8x32xf32>, vector<32x32xf32>, vector<8x32xf32> -> vector<8x32xf32>
    %49 = arith.addf %47, %48 : vector<8x32xf32>
    %50 = math.tanh %49 : vector<8x32xf32>
    %c6_i32 = arith.constant 6 : i32
    %c8_i32_27 = arith.constant 8 : i32
    %51 = arith.muli %c6_i32, %c8_i32_27 : i32
    %52 = tpu.assume_multiple %51, 8 : i32
    %53 = arith.index_cast %52 : i32 to index
    %c0_28 = arith.constant 0 : index
    %54 = vector.load %arg7[%53, %c0_28] : memref<64x32xf32, #tpu.memory_space<vmem>>, vector<8x32xf32>
    %cst_29 = arith.constant dense<0.000000e+00> : vector<8x32xf32>
    %55 = tpu.matmul %50, %7, %cst_29 {dimension_numbers = #tpu.dot_dimension_numbers<[1], [0], [0], [1], [0, 0, 1, 1], [], []>} : vector<8x32xf32>, vector<32x32xf32>, vector<8x32xf32> -> vector<8x32xf32>
    %56 = arith.addf %54, %55 : vector<8x32xf32>
    %57 = math.tanh %56 : vector<8x32xf32>
    %c7_i32 = arith.constant 7 : i32
    %c8_i32_30 = arith.constant 8 : i32
    %58 = arith.muli %c7_i32, %c8_i32_30 : i32
    %59 = tpu.assume_multiple %58, 8 : i32
    %60 = arith.index_cast %59 : i32 to index
    %c0_31 = arith.constant 0 : index
    %61 = vector.load %arg7[%60, %c0_31] : memref<64x32xf32, #tpu.memory_space<vmem>>, vector<8x32xf32>
    %cst_32 = arith.constant dense<0.000000e+00> : vector<8x32xf32>
    %62 = tpu.matmul %57, %7, %cst_32 {dimension_numbers = #tpu.dot_dimension_numbers<[1], [0], [0], [1], [0, 0, 1, 1], [], []>} : vector<8x32xf32>, vector<32x32xf32>, vector<8x32xf32> -> vector<8x32xf32>
    %63 = arith.addf %61, %62 : vector<8x32xf32>
    %64 = math.tanh %63 : vector<8x32xf32>
    %c8_i32_33 = arith.constant 8 : i32
    %c0_34 = arith.constant 0 : index
    %c0_35 = arith.constant 0 : index
    %65 = vector.load %arg4[%c0_34, %c0_35] : memref<32x128xf32, #tpu.memory_space<vmem>>, vector<32x128xf32>
    %cst_36 = arith.constant dense<0.000000e+00> : vector<8x128xf32>
    %66 = tpu.matmul %64, %65, %cst_36 {dimension_numbers = #tpu.dot_dimension_numbers<[1], [0], [0], [1], [0, 0, 1, 1], [], []>} : vector<8x32xf32>, vector<32x128xf32>, vector<8x128xf32> -> vector<8x128xf32>
    %c0_37 = arith.constant 0 : index
    %c0_38 = arith.constant 0 : index
    %67 = vector.load %arg5[%c0_37, %c0_38] : memref<1x128xf32, #tpu.memory_space<vmem>>, vector<1x128xf32>
    %68 = vector.broadcast %67 : vector<1x128xf32> to vector<8x128xf32>
    %69 = arith.addf %66, %68 : vector<8x128xf32>
    %c0_39 = arith.constant 0 : index
    %c0_40 = arith.constant 0 : index
    %70 = vector.load %arg6[%c0_39, %c0_40] : memref<8x128xf32, #tpu.memory_space<vmem>>, vector<8x128xf32>
    tpu.vector_store %arg6[%c0_39, %c0_40], %69 {strides = array<i32>} : memref<8x128xf32, #tpu.memory_space<vmem>>, vector<8x128xf32>,
    return
  }
}

</mosaic_0001>

<llo_original>
// kernel: tpu_custom_call.1
$region0: #{tpu_custom_call.1}
  #allocation0 [shape = 'u32[]', space=smem, size = 0x4, offset = 0x4, fixed_abs, tag = 'smem constant byte address 0x4 - core index']
  #allocation1 [shape = 'u32[144,128]{1,0:T(1,128)}', space=vmem, size = 0x12000, scoped, tag = 'internal scratch']
  #allocation2 [shape = 'f32[64,32]{1,0:T(8,128)}', space=vmem, size = 0x8000, scoped, tag = 'scratch operand']
  %s0 = inlined_call_operand.vmem [shape: f32[64,16], index: 0, kind: input, shape index: {}]
  %s1 = inlined_call_operand.vmem [shape: f32[16,32], index: 1, kind: input, shape index: {}]
  %s2 = inlined_call_operand.vmem [shape: f32[1,32], index: 2, kind: input, shape index: {}]
  %s3 = inlined_call_operand.vmem [shape: f32[32,32], index: 3, kind: input, shape index: {}]
  %s4 = inlined_call_operand.vmem [shape: f32[32,128], index: 4, kind: input, shape index: {}]
  %s5 = inlined_call_operand.vmem [shape: f32[1,128], index: 5, kind: input, shape index: {}]
  %s6 = inlined_call_operand.hbm [shape: f32[8,128], index: 6, kind: output, shape index: {}]
  %s7 = sld [smem:[#allocation0]]
  $region34: #{tpu_custom_call.1} parent=0
    _
  %s9 = ssub.s32 1, %s7
  %s10 = scalar_select 0, %s9, %s7
  $region1: #{tpu_custom_call.1} parent=0
    #allocation3 [shape = 'u8[4096]{0}', space=vmem, size = 0x1000, scoped, tag = 'output window, operand 0, single buffered']
    #allocation4 [shape = 's32[1]{0}', space=sflag, size = 0x4, scoped, tag = 'scoped memory for tpu_custom_call.1']
    %11 = vsyncpa [#allocation4], 0
    // Predicated region
    $region2: #{tpu_custom_call.1} parent=1 // pred_check
      _
    $region3: #{tpu_custom_call.1} parent=1 // pred_check_branch
      %13 = sbr.rel (0) target = $region5
    $region4: #{tpu_custom_call.1} parent=1 // pred_region
      _
    $region5: #{tpu_custom_call.1} parent=1 // pred_fallthru
      _
    // Predicated region
    $region6: #{tpu_custom_call.1} parent=1 // pred_check
      _
    $region7: #{tpu_custom_call.1} parent=1 // pred_check_branch
      %15 = sbr.rel (0) target = $region9
    $region8: #{tpu_custom_call.1} parent=1 // pred_region
      _
    $region9: #{tpu_custom_call.1} parent=1 // pred_fallthru
      _
    // Predicated region
    $region10: #{tpu_custom_call.1} parent=1 // pred_check
      _
    $region11: #{tpu_custom_call.1} parent=1 // pred_check_branch
      %17 = sbr.rel (0) target = $region13
    $region12: #{tpu_custom_call.1} parent=1 // pred_region
      _
    $region13: #{tpu_custom_call.1} parent=1 // pred_fallthru
      _
    // Predicated region
    $region14: #{tpu_custom_call.1} parent=1 // pred_check
      _
    $region15: #{tpu_custom_call.1} parent=1 // pred_check_branch
      %19 = sbr.rel (0) target = $region17
    $region16: #{tpu_custom_call.1} parent=1 // pred_region
      _
    $region17: #{tpu_custom_call.1} parent=1 // pred_fallthru
      _
    // Predicated region
    $region18: #{tpu_custom_call.1} parent=1 // pred_check
      _
    $region19: #{tpu_custom_call.1} parent=1 // pred_check_branch
      %21 = sbr.rel (0) target = $region21
    $region20: #{tpu_custom_call.1} parent=1 // pred_region
      _
    $region21: #{tpu_custom_call.1} parent=1 // pred_fallthru
      _
    // Predicated region
    $region22: #{tpu_custom_call.1} parent=1 // pred_check
      _
    $region23: #{tpu_custom_call.1} parent=1 // pred_check_branch
      %23 = sbr.rel (0) target = $region25
    $region24: #{tpu_custom_call.1} parent=1 // pred_region
      _
    $region25: #{tpu_custom_call.1} parent=1 // pred_fallthru
      _
    %v24 = vld [vmem:[%s0] sm:$0xff]
    %v25 = vld [vmem:[%s0 + $0x8] sm:$0xff]
    %v26 = vld [vmem:[%s0 + $0x10] sm:$0xff]
    %v27 = vld [vmem:[%s0 + $0x18] sm:$0xff]
    %v28 = vld [vmem:[%s0 + $0x20] sm:$0xff]
    %v29 = vld [vmem:[%s0 + $0x28] sm:$0xff]
    %v30 = vld [vmem:[%s0 + $0x30] sm:$0xff]
    %v31 = vld [vmem:[%s0 + $0x38] sm:$0xff]
    %v32 = vld [vmem:[%s1] sm:$0xff]
    %v33 = vld [vmem:[%s1 + $0x8] sm:$0xff]
    %v34 = vld [vmem:[%s2] sm:$0x1]
    %v36 = vlaneseq
    %v37 = vshrl.u32 %v36, 7
    %v38 = vsub.s32 0, %v37
    %v39 = vrot.slane %v34, %v38
    %vm41 = vcmask 130048
    %v43 = vsel %vm41, %v24, 0
    %v46 = vsel %vm41, %v25, 0
    %v49 = vsel %vm41, %v26, 0
    %v52 = vsel %vm41, %v27, 0
    %v55 = vsel %vm41, %v28, 0
    %v58 = vsel %vm41, %v29, 0
    %v61 = vsel %vm41, %v30, 0
    %v64 = vsel %vm41, %v31, 0
    %66 = vmatprep.subr.mxu0 0.0
    %67 = vmatpush1.msra.mxu0 %v32
    %68 = vmatprep.subr.mxu0 0.0
    %69 = vmatpush1.msra.mxu0 %v33
    %70 = vmatprep.subr.mxu0 0.0
    %71 = vmatpush1.msra.mxu0 0.0
    %72 = vmatprep.subr.mxu0 0.0
    %73 = vmatpush1.msra.mxu0 0.0
    %74 = vmatprep.subr.mxu0 0.0
    %75 = vmatpush1.msra.mxu0 0.0
    %76 = vmatprep.subr.mxu0 0.0
    %77 = vmatpush1.msra.mxu0 0.0
    %78 = vmatprep.subr.mxu0 0.0
    %79 = vmatpush1.msra.mxu0 0.0
    %80 = vmatprep.subr.mxu0 0.0
    %81 = vmatpush1.msra.mxu0 0.0
    %82 = vmatprep.subr.mxu0 0.0
    %83 = vmatpush1.msra.mxu0 0.0
    %84 = vmatprep.subr.mxu0 0.0
    %85 = vmatpush1.msra.mxu0 0.0
    %86 = vmatprep.subr.mxu0 0.0
    %87 = vmatpush1.msra.mxu0 0.0
    %88 = vmatprep.subr.mxu0 0.0
    %89 = vmatpush1.msra.mxu0 0.0
    %90 = vmatprep.subr.mxu0 0.0
    %91 = vmatpush1.msra.mxu0 0.0
    %92 = vmatprep.subr.mxu0 0.0
    %93 = vmatpush1.msra.mxu0 0.0
    %94 = vmatprep.subr.mxu0 0.0
    %95 = vmatpush1.msra.mxu0 0.0
    %96 = vmatprep.subr.mxu0 0.0
    %97 = vmatpush1.msra.mxu0 0.0
    %98 = vmatprep.subr.mxu0 0.0
    %99 = vmatpush1.msra.mxu0 0.0
    %100 = vmatprep.subr.mxu0 0.0
    %101 = vmatpush1.msra.mxu0 0.0
    %102 = vmatprep.subr.mxu0 0.0
    %103 = vmatpush1.msra.mxu0 0.0
    %104 = vmatprep.subr.mxu0 0.0
    %105 = vmatpush1.msra.mxu0 0.0
    %106 = vmatprep.subr.mxu0 0.0
    %107 = vmatpush1.msra.mxu0 0.0
    %108 = vmatprep.subr.mxu0 0.0
    %109 = vmatpush1.msra.mxu0 0.0
    %110 = vmatprep.subr.mxu0 0.0
    %111 = vmatpush1.msra.mxu0 0.0
    %112 = vmatprep.subr.mxu0 0.0
    %113 = vmatpush1.msra.mxu0 0.0
    %114 = vmatprep.subr.mxu0 0.0
    %115 = vmatpush1.msra.mxu0 0.0
    %116 = vmatprep.subr.mxu0 0.0
    %117 = vmatpush1.msra.mxu0 0.0
    %118 = vmatprep.subr.mxu0 0.0
    %119 = vmatpush1.msra.mxu0 0.0
    %120 = vmatprep.subr.mxu0 0.0
    %121 = vmatpush1.msra.mxu0 0.0
    %122 = vmatprep.subr.mxu0 0.0
    %123 = vmatpush1.msra.mxu0 0.0
    %124 = vmatprep.subr.mxu0 0.0
    %125 = vmatpush1.msra.mxu0 0.0
    %126 = vmatprep.subr.mxu0 0.0
    %127 = vmatpush1.msra.mxu0 0.0
    %128 = vmatprep.subr.mxu0 0.0
    %129 = vmatpush1.msra.mxu0 0.0
    %130 = vmatprep.mubr.f32.mxu0 0.0
    %131 = vmatmul.mubr.f32.gmra.mrb[0].mxu0 %v43
    %v132 = vpop.f32.mrb[0].mxu0
    %v133 = vadd.f32 %v39, %v132
    %v134 = vpop.f32.mrb[0].mxu0
    %135 = vmatprep.mubr.f32.mxu0 0.0
    %136 = vmatmul.mubr.f32.gmra.mrb[0].mxu0 %v46
    %v137 = vpop.f32.mrb[0].mxu0
    %v138 = vadd.f32 %v39, %v137
    %v139 = vpop.f32.mrb[0].mxu0
    %140 = vmatprep.mubr.f32.mxu0 0.0
    %141 = vmatmul.mubr.f32.gmra.mrb[0].mxu0 %v49
    %v142 = vpop.f32.mrb[0].mxu0
    %v143 = vadd.f32 %v39, %v142
    %v144 = vpop.f32.mrb[0].mxu0
    %145 = vmatprep.mubr.f32.mxu0 0.0
    %146 = vmatmul.mubr.f32.gmra.mrb[0].mxu0 %v52
    %v147 = vpop.f32.mrb[0].mxu0
    %v148 = vadd.f32 %v39, %v147
    %v149 = vpop.f32.mrb[0].mxu0
    %150 = vmatprep.mubr.f32.mxu0 0.0
    %151 = vmatmul.mubr.f32.gmra.mrb[0].mxu0 %v55
    %v152 = vpop.f32.mrb[0].mxu0
    %v153 = vadd.f32 %v39, %v152
    %v154 = vpop.f32.mrb[0].mxu0
    %155 = vmatprep.mubr.f32.mxu0 0.0
    %156 = vmatmul.mubr.f32.gmra.mrb[0].mxu0 %v58
    %v157 = vpop.f32.mrb[0].mxu0
    %v158 = vadd.f32 %v39, %v157
    %v159 = vpop.f32.mrb[0].mxu0
    %160 = vmatprep.mubr.f32.mxu0 0.0
    %161 = vmatmul.mubr.f32.gmra.mrb[0].mxu0 %v61
    %v162 = vpop.f32.mrb[0].mxu0
    %v163 = vadd.f32 %v39, %v162
    %v164 = vpop.f32.mrb[0].mxu0
    %165 = vmatprep.mubr.f32.mxu0 0.0
    %166 = vmatmul.mubr.f32.gmra.mrb[0].mxu0 %v64
    %v167 = vpop.f32.mrb[0].mxu0
    %v168 = vadd.f32 %v39, %v167
    %v169 = vpop.f32.mrb[0].mxu0
    %170 = vdwg.mxu0
    %vm171 = vcmask 261120
    %172 = vst.msk [vmem:[#allocation2] sm:$0xff] %vm171, %v133
    %173 = vst.msk [vmem:[#allocation2 + $0x8] sm:$0xff] %vm171, %v138
    %174 = vst.msk [vmem:[#allocation2 + $0x10] sm:$0xff] %vm171, %v143
    %175 = vst.msk [vmem:[#allocation2 + $0x18] sm:$0xff] %vm171, %v148
    %176 = vst.msk [vmem:[#allocation2 + $0x20] sm:$0xff] %vm171, %v153
    %177 = vst.msk [vmem:[#allocation2 + $0x28] sm:$0xff] %vm171, %v158
    %178 = vst.msk [vmem:[#allocation2 + $0x30] sm:$0xff] %vm171, %v163
    %179 = vst.msk [vmem:[#allocation2 + $0x38] sm:$0xff] %vm171, %v168
    %v180 = vld [vmem:[%s3] sm:$0xff]
    %v181 = vld [vmem:[%s3 + $0x8] sm:$0xff]
    %v182 = vld [vmem:[%s3 + $0x10] sm:$0xff]
    %v183 = vld [vmem:[%s3 + $0x18] sm:$0xff]
    %v184 = vld [vmem:[#allocation2] sm:$0xff]
    %v186 = vsel %vm171, 0.0, 0
    %188 = vmatprep.subr.mxu0 0.0
    %189 = vmatpush1.msra.mxu0 %v180
    %190 = vmatprep.subr.mxu0 0.0
    %191 = vmatpush1.msra.mxu0 %v181
    %192 = vmatprep.subr.mxu0 0.0
    %193 = vmatpush1.msra.mxu0 %v182
    %194 = vmatprep.subr.mxu0 0.0
    %195 = vmatpush1.msra.mxu0 %v183
    %196 = vmatprep.subr.mxu0 0.0
    %197 = vmatpush1.msra.mxu0 0.0
    %198 = vmatprep.subr.mxu0 0.0
    %199 = vmatpush1.msra.mxu0 0.0
    %200 = vmatprep.subr.mxu0 0.0
    %201 = vmatpush1.msra.mxu0 0.0
    %202 = vmatprep.subr.mxu0 0.0
    %203 = vmatpush1.msra.mxu0 0.0
    %204 = vmatprep.subr.mxu0 0.0
    %205 = vmatpush1.msra.mxu0 0.0
    %206 = vmatprep.subr.mxu0 0.0
    %207 = vmatpush1.msra.mxu0 0.0
    %208 = vmatprep.subr.mxu0 0.0
    %209 = vmatpush1.msra.mxu0 0.0
    %210 = vmatprep.subr.mxu0 0.0
    %211 = vmatpush1.msra.mxu0 0.0
    %212 = vmatprep.subr.mxu0 0.0
    %213 = vmatpush1.msra.mxu0 0.0
    %214 = vmatprep.subr.mxu0 0.0
    %215 = vmatpush1.msra.mxu0 0.0
    %216 = vmatprep.subr.mxu0 0.0
    %217 = vmatpush1.msra.mxu0 0.0
    %218 = vmatprep.subr.mxu0 0.0
    %219 = vmatpush1.msra.mxu0 0.0
    %220 = vmatprep.subr.mxu0 0.0
    %221 = vmatpush1.msra.mxu0 0.0
    %222 = vmatprep.subr.mxu0 0.0
    %223 = vmatpush1.msra.mxu0 0.0
    %224 = vmatprep.subr.mxu0 0.0
    %225 = vmatpush1.msra.mxu0 0.0
    %226 = vmatprep.subr.mxu0 0.0
    %227 = vmatpush1.msra.mxu0 0.0
    %228 = vmatprep.subr.mxu0 0.0
    %229 = vmatpush1.msra.mxu0 0.0
    %230 = vmatprep.subr.mxu0 0.0
    %231 = vmatpush1.msra.mxu0 0.0
    %232 = vmatprep.subr.mxu0 0.0
    %233 = vmatpush1.msra.mxu0 0.0
    %234 = vmatprep.subr.mxu0 0.0
    %235 = vmatpush1.msra.mxu0 0.0
    %236 = vmatprep.subr.mxu0 0.0
    %237 = vmatpush1.msra.mxu0 0.0
    %238 = vmatprep.subr.mxu0 0.0
    %239 = vmatpush1.msra.mxu0 0.0
    %240 = vmatprep.subr.mxu0 0.0
    %241 = vmatpush1.msra.mxu0 0.0
    %242 = vmatprep.subr.mxu0 0.0
    %243 = vmatpush1.msra.mxu0 0.0
    %244 = vmatprep.subr.mxu0 0.0
    %245 = vmatpush1.msra.mxu0 0.0
    %246 = vmatprep.subr.mxu0 0.0
    %247 = vmatpush1.msra.mxu0 0.0
    %248 = vmatprep.subr.mxu0 0.0
    %249 = vmatpush1.msra.mxu0 0.0
    %250 = vmatprep.subr.mxu0 0.0
    %251 = vmatpush1.msra.mxu0 0.0
    %252 = vmatprep.mubr.f32.mxu0 0.0
    %253 = vmatmul.mubr.f32.gmra.mrb[0].mxu0 %v186
    %v254 = vpop.f32.mrb[0].mxu0
    %v255 = vadd.f32 0.0, %v254
    %v256 = vpop.f32.mrb[0].mxu0
    %257 = vdwg.mxu0
    %v258 = vadd.f32 %v184, %v255
    %v259 = vtanh.pop %v258
    %s260 = scalar_lea.vmem [#allocation2], 8
    %v261 = vld [vmem:[%s260] sm:$0xff]
    %v263 = vsel %vm171, %v259, 0
    %265 = vmatprep.subr.mxu0 0.0
    %266 = vmatpush1.msra.mxu0 %v180
    %267 = vmatprep.subr.mxu0 0.0
    %268 = vmatpush1.msra.mxu0 %v181
    %269 = vmatprep.subr.mxu0 0.0
    %270 = vmatpush1.msra.mxu0 %v182
    %271 = vmatprep.subr.mxu0 0.0
    %272 = vmatpush1.msra.mxu0 %v183
    %273 = vmatprep.subr.mxu0 0.0
    %274 = vmatpush1.msra.mxu0 0.0
    %275 = vmatprep.subr.mxu0 0.0
    %276 = vmatpush1.msra.mxu0 0.0
    %277 = vmatprep.subr.mxu0 0.0
    %278 = vmatpush1.msra.mxu0 0.0
    %279 = vmatprep.subr.mxu0 0.0
    %280 = vmatpush1.msra.mxu0 0.0
    %281 = vmatprep.subr.mxu0 0.0
    %282 = vmatpush1.msra.mxu0 0.0
    %283 = vmatprep.subr.mxu0 0.0
    %284 = vmatpush1.msra.mxu0 0.0
    %285 = vmatprep.subr.mxu0 0.0
    %286 = vmatpush1.msra.mxu0 0.0
    %287 = vmatprep.subr.mxu0 0.0
    %288 = vmatpush1.msra.mxu0 0.0
    %289 = vmatprep.subr.mxu0 0.0
    %290 = vmatpush1.msra.mxu0 0.0
    %291 = vmatprep.subr.mxu0 0.0
    %292 = vmatpush1.msra.mxu0 0.0
    %293 = vmatprep.subr.mxu0 0.0
    %294 = vmatpush1.msra.mxu0 0.0
    %295 = vmatprep.subr.mxu0 0.0
    %296 = vmatpush1.msra.mxu0 0.0
    %297 = vmatprep.subr.mxu0 0.0
    %298 = vmatpush1.msra.mxu0 0.0
    %299 = vmatprep.subr.mxu0 0.0
    %300 = vmatpush1.msra.mxu0 0.0
    %301 = vmatprep.subr.mxu0 0.0
    %302 = vmatpush1.msra.mxu0 0.0
    %303 = vmatprep.subr.mxu0 0.0
    %304 = vmatpush1.msra.mxu0 0.0
    %305 = vmatprep.subr.mxu0 0.0
    %306 = vmatpush1.msra.mxu0 0.0
    %307 = vmatprep.subr.mxu0 0.0
    %308 = vmatpush1.msra.mxu0 0.0
    %309 = vmatprep.subr.mxu0 0.0
    %310 = vmatpush1.msra.mxu0 0.0
    %311 = vmatprep.subr.mxu0 0.0
    %312 = vmatpush1.msra.mxu0 0.0
    %313 = vmatprep.subr.mxu0 0.0
    %314 = vmatpush1.msra.mxu0 0.0
    %315 = vmatprep.subr.mxu0 0.0
    %316 = vmatpush1.msra.mxu0 0.0
    %317 = vmatprep.subr.mxu0 0.0
    %318 = vmatpush1.msra.mxu0 0.0
    %319 = vmatprep.subr.mxu0 0.0
    %320 = vmatpush1.msra.mxu0 0.0
    %321 = vmatprep.subr.mxu0 0.0
    %322 = vmatpush1.msra.mxu0 0.0
    %323 = vmatprep.subr.mxu0 0.0
    %324 = vmatpush1.msra.mxu0 0.0
    %325 = vmatprep.subr.mxu0 0.0
    %326 = vmatpush1.msra.mxu0 0.0
    %327 = vmatprep.subr.mxu0 0.0
    %328 = vmatpush1.msra.mxu0 0.0
    %329 = vmatprep.mubr.f32.mxu0 0.0
    %330 = vmatmul.mubr.f32.gmra.mrb[0].mxu0 %v263
    %v331 = vpop.f32.mrb[0].mxu0
    %v332 = vadd.f32 0.0, %v331
    %v333 = vpop.f32.mrb[0].mxu0
    %334 = vdwg.mxu0
    %v335 = vadd.f32 %v261, %v332
    %v336 = vtanh.pop %v335
    %s337 = scalar_lea.vmem [#allocation2], 16
    %v338 = vld [vmem:[%s337] sm:$0xff]
    %v340 = vsel %vm171, %v336, 0
    %342 = vmatprep.subr.mxu0 0.0
    %343 = vmatpush1.msra.mxu0 %v180
    %344 = vmatprep.subr.mxu0 0.0
    %345 = vmatpush1.msra.mxu0 %v181
    %346 = vmatprep.subr.mxu0 0.0
    %347 = vmatpush1.msra.mxu0 %v182
    %348 = vmatprep.subr.mxu0 0.0
    %349 = vmatpush1.msra.mxu0 %v183
    %350 = vmatprep.subr.mxu0 0.0
    %351 = vmatpush1.msra.mxu0 0.0
    %352 = vmatprep.subr.mxu0 0.0
    %353 = vmatpush1.msra.mxu0 0.0
    %354 = vmatprep.subr.mxu0 0.0
    %355 = vmatpush1.msra.mxu0 0.0
    %356 = vmatprep.subr.mxu0 0.0
    %357 = vmatpush1.msra.mxu0 0.0
    %358 = vmatprep.subr.mxu0 0.0
    %359 = vmatpush1.msra.mxu0 0.0
    %360 = vmatprep.subr.mxu0 0.0
    %361 = vmatpush1.msra.mxu0 0.0
    %362 = vmatprep.subr.mxu0 0.0
    %363 = vmatpush1.msra.mxu0 0.0
    %364 = vmatprep.subr.mxu0 0.0
    %365 = vmatpush1.msra.mxu0 0.0
    %366 = vmatprep.subr.mxu0 0.0
    %367 = vmatpush1.msra.mxu0 0.0
    %368 = vmatprep.subr.mxu0 0.0
    %369 = vmatpush1.msra.mxu0 0.0
    %370 = vmatprep.subr.mxu0 0.0
    %371 = vmatpush1.msra.mxu0 0.0
    %372 = vmatprep.subr.mxu0 0.0
    %373 = vmatpush1.msra.mxu0 0.0
    %374 = vmatprep.subr.mxu0 0.0
    %375 = vmatpush1.msra.mxu0 0.0
    %376 = vmatprep.subr.mxu0 0.0
    %377 = vmatpush1.msra.mxu0 0.0
    %378 = vmatprep.subr.mxu0 0.0
    %379 = vmatpush1.msra.mxu0 0.0
    %380 = vmatprep.subr.mxu0 0.0
    %381 = vmatpush1.msra.mxu0 0.0
    %382 = vmatprep.subr.mxu0 0.0
    %383 = vmatpush1.msra.mxu0 0.0
    %384 = vmatprep.subr.mxu0 0.0
    %385 = vmatpush1.msra.mxu0 0.0
    %386 = vmatprep.subr.mxu0 0.0
    %387 = vmatpush1.msra.mxu0 0.0
    %388 = vmatprep.subr.mxu0 0.0
    %389 = vmatpush1.msra.mxu0 0.0
    %390 = vmatprep.subr.mxu0 0.0
    %391 = vmatpush1.msra.mxu0 0.0
    %392 = vmatprep.subr.mxu0 0.0
    %393 = vmatpush1.msra.mxu0 0.0
    %394 = vmatprep.subr.mxu0 0.0
    %395 = vmatpush1.msra.mxu0 0.0
    %396 = vmatprep.subr.mxu0 0.0
    %397 = vmatpush1.msra.mxu0 0.0
    %398 = vmatprep.subr.mxu0 0.0
    %399 = vmatpush1.msra.mxu0 0.0
    %400 = vmatprep.subr.mxu0 0.0
    %401 = vmatpush1.msra.mxu0 0.0
    %402 = vmatprep.subr.mxu0 0.0
    %403 = vmatpush1.msra.mxu0 0.0
    %404 = vmatprep.subr.mxu0 0.0
    %405 = vmatpush1.msra.mxu0 0.0
    %406 = vmatprep.mubr.f32.mxu0 0.0
    %407 = vmatmul.mubr.f32.gmra.mrb[0].mxu0 %v340
    %v408 = vpop.f32.mrb[0].mxu0
    %v409 = vadd.f32 0.0, %v408
    %v410 = vpop.f32.mrb[0].mxu0
    %411 = vdwg.mxu0
    %v412 = vadd.f32 %v338, %v409
    %v413 = vtanh.pop %v412
    %s414 = scalar_lea.vmem [#allocation2], 24
    %v415 = vld [vmem:[%s414] sm:$0xff]
    %v417 = vsel %vm171, %v413, 0
    %419 = vmatprep.subr.mxu0 0.0
    %420 = vmatpush1.msra.mxu0 %v180
    %421 = vmatprep.subr.mxu0 0.0
    %422 = vmatpush1.msra.mxu0 %v181
    %423 = vmatprep.subr.mxu0 0.0
    %424 = vmatpush1.msra.mxu0 %v182
    %425 = vmatprep.subr.mxu0 0.0
    %426 = vmatpush1.msra.mxu0 %v183
    %427 = vmatprep.subr.mxu0 0.0
    %428 = vmatpush1.msra.mxu0 0.0
    %429 = vmatprep.subr.mxu0 0.0
    %430 = vmatpush1.msra.mxu0 0.0
    %431 = vmatprep.subr.mxu0 0.0
    %432 = vmatpush1.msra.mxu0 0.0
    %433 = vmatprep.subr.mxu0 0.0
    %434 = vmatpush1.msra.mxu0 0.0
    %435 = vmatprep.subr.mxu0 0.0
    %436 = vmatpush1.msra.mxu0 0.0
    %437 = vmatprep.subr.mxu0 0.0
    %438 = vmatpush1.msra.mxu0 0.0
    %439 = vmatprep.subr.mxu0 0.0
    %440 = vmatpush1.msra.mxu0 0.0
    %441 = vmatprep.subr.mxu0 0.0
    %442 = vmatpush1.msra.mxu0 0.0
    %443 = vmatprep.subr.mxu0 0.0
    %444 = vmatpush1.msra.mxu0 0.0
    %445 = vmatprep.subr.mxu0 0.0
    %446 = vmatpush1.msra.mxu0 0.0
    %447 = vmatprep.subr.mxu0 0.0
    %448 = vmatpush1.msra.mxu0 0.0
    %449 = vmatprep.subr.mxu0 0.0
    %450 = vmatpush1.msra.mxu0 0.0
    %451 = vmatprep.subr.mxu0 0.0
    %452 = vmatpush1.msra.mxu0 0.0
    %453 = vmatprep.subr.mxu0 0.0
    %454 = vmatpush1.msra.mxu0 0.0
    %455 = vmatprep.subr.mxu0 0.0
    %456 = vmatpush1.msra.mxu0 0.0
    %457 = vmatprep.subr.mxu0 0.0
    %458 = vmatpush1.msra.mxu0 0.0
    %459 = vmatprep.subr.mxu0 0.0
    %460 = vmatpush1.msra.mxu0 0.0
    %461 = vmatprep.subr.mxu0 0.0
    %462 = vmatpush1.msra.mxu0 0.0
    %463 = vmatprep.subr.mxu0 0.0
    %464 = vmatpush1.msra.mxu0 0.0
    %465 = vmatprep.subr.mxu0 0.0
    %466 = vmatpush1.msra.mxu0 0.0
    %467 = vmatprep.subr.mxu0 0.0
    %468 = vmatpush1.msra.mxu0 0.0
    %469 = vmatprep.subr.mxu0 0.0
    %470 = vmatpush1.msra.mxu0 0.0
    %471 = vmatprep.subr.mxu0 0.0
    %472 = vmatpush1.msra.mxu0 0.0
    %473 = vmatprep.subr.mxu0 0.0
    %474 = vmatpush1.msra.mxu0 0.0
    %475 = vmatprep.subr.mxu0 0.0
    %476 = vmatpush1.msra.mxu0 0.0
    %477 = vmatprep.subr.mxu0 0.0
    %478 = vmatpush1.msra.mxu0 0.0
    %479 = vmatprep.subr.mxu0 0.0
    %480 = vmatpush1.msra.mxu0 0.0
    %481 = vmatprep.subr.mxu0 0.0
    %482 = vmatpush1.msra.mxu0 0.0
    %483 = vmatprep.mubr.f32.mxu0 0.0
    %484 = vmatmul.mubr.f32.gmra.mrb[0].mxu0 %v417
    %v485 = vpop.f32.mrb[0].mxu0
    %v486 = vadd.f32 0.0, %v485
    %v487 = vpop.f32.mrb[0].mxu0
    %488 = vdwg.mxu0
    %v489 = vadd.f32 %v415, %v486
    %v490 = vtanh.pop %v489
    %s491 = scalar_lea.vmem [#allocation2], 32
    %v492 = vld [vmem:[%s491] sm:$0xff]
    %v494 = vsel %vm171, %v490, 0
    %496 = vmatprep.subr.mxu0 0.0
    %497 = vmatpush1.msra.mxu0 %v180
    %498 = vmatprep.subr.mxu0 0.0
    %499 = vmatpush1.msra.mxu0 %v181
    %500 = vmatprep.subr.mxu0 0.0
    %501 = vmatpush1.msra.mxu0 %v182
    %502 = vmatprep.subr.mxu0 0.0
    %503 = vmatpush1.msra.mxu0 %v183
    %504 = vmatprep.subr.mxu0 0.0
    %505 = vmatpush1.msra.mxu0 0.0
    %506 = vmatprep.subr.mxu0 0.0
    %507 = vmatpush1.msra.mxu0 0.0
    %508 = vmatprep.subr.mxu0 0.0
    %509 = vmatpush1.msra.mxu0 0.0
    %510 = vmatprep.subr.mxu0 0.0
    %511 = vmatpush1.msra.mxu0 0.0
    %512 = vmatprep.subr.mxu0 0.0
    %513 = vmatpush1.msra.mxu0 0.0
    %514 = vmatprep.subr.mxu0 0.0
    %515 = vmatpush1.msra.mxu0 0.0
    %516 = vmatprep.subr.mxu0 0.0
    %517 = vmatpush1.msra.mxu0 0.0
    %518 = vmatprep.subr.mxu0 0.0
    %519 = vmatpush1.msra.mxu0 0.0
    %520 = vmatprep.subr.mxu0 0.0
    %521 = vmatpush1.msra.mxu0 0.0
    %522 = vmatprep.subr.mxu0 0.0
    %523 = vmatpush1.msra.mxu0 0.0
    %524 = vmatprep.subr.mxu0 0.0
    %525 = vmatpush1.msra.mxu0 0.0
    %526 = vmatprep.subr.mxu0 0.0
    %527 = vmatpush1.msra.mxu0 0.0
    %528 = vmatprep.subr.mxu0 0.0
    %529 = vmatpush1.msra.mxu0 0.0
    %530 = vmatprep.subr.mxu0 0.0
    %531 = vmatpush1.msra.mxu0 0.0
    %532 = vmatprep.subr.mxu0 0.0
    %533 = vmatpush1.msra.mxu0 0.0
    %534 = vmatprep.subr.mxu0 0.0
    %535 = vmatpush1.msra.mxu0 0.0
    %536 = vmatprep.subr.mxu0 0.0
    %537 = vmatpush1.msra.mxu0 0.0
    %538 = vmatprep.subr.mxu0 0.0
    %539 = vmatpush1.msra.mxu0 0.0
    %540 = vmatprep.subr.mxu0 0.0
    %541 = vmatpush1.msra.mxu0 0.0
    %542 = vmatprep.subr.mxu0 0.0
    %543 = vmatpush1.msra.mxu0 0.0
    %544 = vmatprep.subr.mxu0 0.0
    %545 = vmatpush1.msra.mxu0 0.0
    %546 = vmatprep.subr.mxu0 0.0
    %547 = vmatpush1.msra.mxu0 0.0
    %548 = vmatprep.subr.mxu0 0.0
    %549 = vmatpush1.msra.mxu0 0.0
    %550 = vmatprep.subr.mxu0 0.0
    %551 = vmatpush1.msra.mxu0 0.0
    %552 = vmatprep.subr.mxu0 0.0
    %553 = vmatpush1.msra.mxu0 0.0
    %554 = vmatprep.subr.mxu0 0.0
    %555 = vmatpush1.msra.mxu0 0.0
    %556 = vmatprep.subr.mxu0 0.0
    %557 = vmatpush1.msra.mxu0 0.0
    %558 = vmatprep.subr.mxu0 0.0
    %559 = vmatpush1.msra.mxu0 0.0
    %560 = vmatprep.mubr.f32.mxu0 0.0
    %561 = vmatmul.mubr.f32.gmra.mrb[0].mxu0 %v494
    %v562 = vpop.f32.mrb[0].mxu0
    %v563 = vadd.f32 0.0, %v562
    %v564 = vpop.f32.mrb[0].mxu0
    %565 = vdwg.mxu0
    %v566 = vadd.f32 %v492, %v563
    %v567 = vtanh.pop %v566
    %s568 = scalar_lea.vmem [#allocation2], 40
    %v569 = vld [vmem:[%s568] sm:$0xff]
    %v571 = vsel %vm171, %v567, 0
    %573 = vmatprep.subr.mxu0 0.0
    %574 = vmatpush1.msra.mxu0 %v180
    %575 = vmatprep.subr.mxu0 0.0
    %576 = vmatpush1.msra.mxu0 %v181
    %577 = vmatprep.subr.mxu0 0.0
    %578 = vmatpush1.msra.mxu0 %v182
    %579 = vmatprep.subr.mxu0 0.0
    %580 = vmatpush1.msra.mxu0 %v183
    %581 = vmatprep.subr.mxu0 0.0
    %582 = vmatpush1.msra.mxu0 0.0
    %583 = vmatprep.subr.mxu0 0.0
    %584 = vmatpush1.msra.mxu0 0.0
    %585 = vmatprep.subr.mxu0 0.0
    %586 = vmatpush1.msra.mxu0 0.0
    %587 = vmatprep.subr.mxu0 0.0
    %588 = vmatpush1.msra.mxu0 0.0
    %589 = vmatprep.subr.mxu0 0.0
    %590 = vmatpush1.msra.mxu0 0.0
    %591 = vmatprep.subr.mxu0 0.0
    %592 = vmatpush1.msra.mxu0 0.0
    %593 = vmatprep.subr.mxu0 0.0
    %594 = vmatpush1.msra.mxu0 0.0
    %595 = vmatprep.subr.mxu0 0.0
    %596 = vmatpush1.msra.mxu0 0.0
    %597 = vmatprep.subr.mxu0 0.0
    %598 = vmatpush1.msra.mxu0 0.0
    %599 = vmatprep.subr.mxu0 0.0
    %600 = vmatpush1.msra.mxu0 0.0
    %601 = vmatprep.subr.mxu0 0.0
    %602 = vmatpush1.msra.mxu0 0.0
    %603 = vmatprep.subr.mxu0 0.0
    %604 = vmatpush1.msra.mxu0 0.0
    %605 = vmatprep.subr.mxu0 0.0
    %606 = vmatpush1.msra.mxu0 0.0
    %607 = vmatprep.subr.mxu0 0.0
    %608 = vmatpush1.msra.mxu0 0.0
    %609 = vmatprep.subr.mxu0 0.0
    %610 = vmatpush1.msra.mxu0 0.0
    %611 = vmatprep.subr.mxu0 0.0
    %612 = vmatpush1.msra.mxu0 0.0
    %613 = vmatprep.subr.mxu0 0.0
    %614 = vmatpush1.msra.mxu0 0.0
    %615 = vmatprep.subr.mxu0 0.0
    %616 = vmatpush1.msra.mxu0 0.0
    %617 = vmatprep.subr.mxu0 0.0
    %618 = vmatpush1.msra.mxu0 0.0
    %619 = vmatprep.subr.mxu0 0.0
    %620 = vmatpush1.msra.mxu0 0.0
    %621 = vmatprep.subr.mxu0 0.0
    %622 = vmatpush1.msra.mxu0 0.0
    %623 = vmatprep.subr.mxu0 0.0
    %624 = vmatpush1.msra.mxu0 0.0
    %625 = vmatprep.subr.mxu0 0.0
    %626 = vmatpush1.msra.mxu0 0.0
    %627 = vmatprep.subr.mxu0 0.0
    %628 = vmatpush1.msra.mxu0 0.0
    %629 = vmatprep.subr.mxu0 0.0
    %630 = vmatpush1.msra.mxu0 0.0
    %631 = vmatprep.subr.mxu0 0.0
    %632 = vmatpush1.msra.mxu0 0.0
    %633 = vmatprep.subr.mxu0 0.0
    %634 = vmatpush1.msra.mxu0 0.0
    %635 = vmatprep.subr.mxu0 0.0
    %636 = vmatpush1.msra.mxu0 0.0
    %637 = vmatprep.mubr.f32.mxu0 0.0
    %638 = vmatmul.mubr.f32.gmra.mrb[0].mxu0 %v571
    %v639 = vpop.f32.mrb[0].mxu0
    %v640 = vadd.f32 0.0, %v639
    %v641 = vpop.f32.mrb[0].mxu0
    %642 = vdwg.mxu0
    %v643 = vadd.f32 %v569, %v640
    %v644 = vtanh.pop %v643
    %s645 = scalar_lea.vmem [#allocation2], 48
    %v646 = vld [vmem:[%s645] sm:$0xff]
    %v648 = vsel %vm171, %v644, 0
    %650 = vmatprep.subr.mxu0 0.0
    %651 = vmatpush1.msra.mxu0 %v180
    %652 = vmatprep.subr.mxu0 0.0
    %653 = vmatpush1.msra.mxu0 %v181
    %654 = vmatprep.subr.mxu0 0.0
    %655 = vmatpush1.msra.mxu0 %v182
    %656 = vmatprep.subr.mxu0 0.0
    %657 = vmatpush1.msra.mxu0 %v183
    %658 = vmatprep.subr.mxu0 0.0
    %659 = vmatpush1.msra.mxu0 0.0
    %660 = vmatprep.subr.mxu0 0.0
    %661 = vmatpush1.msra.mxu0 0.0
    %662 = vmatprep.subr.mxu0 0.0
    %663 = vmatpush1.msra.mxu0 0.0
    %664 = vmatprep.subr.mxu0 0.0
    %665 = vmatpush1.msra.mxu0 0.0
    %666 = vmatprep.subr.mxu0 0.0
    %667 = vmatpush1.msra.mxu0 0.0
    %668 = vmatprep.subr.mxu0 0.0
    %669 = vmatpush1.msra.mxu0 0.0
    %670 = vmatprep.subr.mxu0 0.0
    %671 = vmatpush1.msra.mxu0 0.0
    %672 = vmatprep.subr.mxu0 0.0
    %673 = vmatpush1.msra.mxu0 0.0
    %674 = vmatprep.subr.mxu0 0.0
    %675 = vmatpush1.msra.mxu0 0.0
    %676 = vmatprep.subr.mxu0 0.0
    %677 = vmatpush1.msra.mxu0 0.0
    %678 = vmatprep.subr.mxu0 0.0
    %679 = vmatpush1.msra.mxu0 0.0
    %680 = vmatprep.subr.mxu0 0.0
    %681 = vmatpush1.msra.mxu0 0.0
    %682 = vmatprep.subr.mxu0 0.0
    %683 = vmatpush1.msra.mxu0 0.0
    %684 = vmatprep.subr.mxu0 0.0
    %685 = vmatpush1.msra.mxu0 0.0
    %686 = vmatprep.subr.mxu0 0.0
    %687 = vmatpush1.msra.mxu0 0.0
    %688 = vmatprep.subr.mxu0 0.0
    %689 = vmatpush1.msra.mxu0 0.0
    %690 = vmatprep.subr.mxu0 0.0
    %691 = vmatpush1.msra.mxu0 0.0
    %692 = vmatprep.subr.mxu0 0.0
    %693 = vmatpush1.msra.mxu0 0.0
    %694 = vmatprep.subr.mxu0 0.0
    %695 = vmatpush1.msra.mxu0 0.0
    %696 = vmatprep.subr.mxu0 0.0
    %697 = vmatpush1.msra.mxu0 0.0
    %698 = vmatprep.subr.mxu0 0.0
    %699 = vmatpush1.msra.mxu0 0.0
    %700 = vmatprep.subr.mxu0 0.0
    %701 = vmatpush1.msra.mxu0 0.0
    %702 = vmatprep.subr.mxu0 0.0
    %703 = vmatpush1.msra.mxu0 0.0
    %704 = vmatprep.subr.mxu0 0.0
    %705 = vmatpush1.msra.mxu0 0.0
    %706 = vmatprep.subr.mxu0 0.0
    %707 = vmatpush1.msra.mxu0 0.0
    %708 = vmatprep.subr.mxu0 0.0
    %709 = vmatpush1.msra.mxu0 0.0
    %710 = vmatprep.subr.mxu0 0.0
    %711 = vmatpush1.msra.mxu0 0.0
    %712 = vmatprep.subr.mxu0 0.0
    %713 = vmatpush1.msra.mxu0 0.0
    %714 = vmatprep.mubr.f32.mxu0 0.0
    %715 = vmatmul.mubr.f32.gmra.mrb[0].mxu0 %v648
    %v716 = vpop.f32.mrb[0].mxu0
    %v717 = vadd.f32 0.0, %v716
    %v718 = vpop.f32.mrb[0].mxu0
    %719 = vdwg.mxu0
    %v720 = vadd.f32 %v646, %v717
    %v721 = vtanh.pop %v720
    %s722 = scalar_lea.vmem [#allocation2], 56
    %v723 = vld [vmem:[%s722] sm:$0xff]
    %v725 = vsel %vm171, %v721, 0
    %727 = vmatprep.subr.mxu0 0.0
    %728 = vmatpush1.msra.mxu0 %v180
    %729 = vmatprep.subr.mxu0 0.0
    %730 = vmatpush1.msra.mxu0 %v181
    %731 = vmatprep.subr.mxu0 0.0
    %732 = vmatpush1.msra.mxu0 %v182
    %733 = vmatprep.subr.mxu0 0.0
    %734 = vmatpush1.msra.mxu0 %v183
    %735 = vmatprep.subr.mxu0 0.0
    %736 = vmatpush1.msra.mxu0 0.0
    %737 = vmatprep.subr.mxu0 0.0
    %738 = vmatpush1.msra.mxu0 0.0
    %739 = vmatprep.subr.mxu0 0.0
    %740 = vmatpush1.msra.mxu0 0.0
    %741 = vmatprep.subr.mxu0 0.0
    %742 = vmatpush1.msra.mxu0 0.0
    %743 = vmatprep.subr.mxu0 0.0
    %744 = vmatpush1.msra.mxu0 0.0
    %745 = vmatprep.subr.mxu0 0.0
    %746 = vmatpush1.msra.mxu0 0.0
    %747 = vmatprep.subr.mxu0 0.0
    %748 = vmatpush1.msra.mxu0 0.0
    %749 = vmatprep.subr.mxu0 0.0
    %750 = vmatpush1.msra.mxu0 0.0
    %751 = vmatprep.subr.mxu0 0.0
    %752 = vmatpush1.msra.mxu0 0.0
    %753 = vmatprep.subr.mxu0 0.0
    %754 = vmatpush1.msra.mxu0 0.0
    %755 = vmatprep.subr.mxu0 0.0
    %756 = vmatpush1.msra.mxu0 0.0
    %757 = vmatprep.subr.mxu0 0.0
    %758 = vmatpush1.msra.mxu0 0.0
    %759 = vmatprep.subr.mxu0 0.0
    %760 = vmatpush1.msra.mxu0 0.0
    %761 = vmatprep.subr.mxu0 0.0
    %762 = vmatpush1.msra.mxu0 0.0
    %763 = vmatprep.subr.mxu0 0.0
    %764 = vmatpush1.msra.mxu0 0.0
    %765 = vmatprep.subr.mxu0 0.0
    %766 = vmatpush1.msra.mxu0 0.0
    %767 = vmatprep.subr.mxu0 0.0
    %768 = vmatpush1.msra.mxu0 0.0
    %769 = vmatprep.subr.mxu0 0.0
    %770 = vmatpush1.msra.mxu0 0.0
    %771 = vmatprep.subr.mxu0 0.0
    %772 = vmatpush1.msra.mxu0 0.0
    %773 = vmatprep.subr.mxu0 0.0
    %774 = vmatpush1.msra.mxu0 0.0
    %775 = vmatprep.subr.mxu0 0.0
    %776 = vmatpush1.msra.mxu0 0.0
    %777 = vmatprep.subr.mxu0 0.0
    %778 = vmatpush1.msra.mxu0 0.0
    %779 = vmatprep.subr.mxu0 0.0
    %780 = vmatpush1.msra.mxu0 0.0
    %781 = vmatprep.subr.mxu0 0.0
    %782 = vmatpush1.msra.mxu0 0.0
    %783 = vmatprep.subr.mxu0 0.0
    %784 = vmatpush1.msra.mxu0 0.0
    %785 = vmatprep.subr.mxu0 0.0
    %786 = vmatpush1.msra.mxu0 0.0
    %787 = vmatprep.subr.mxu0 0.0
    %788 = vmatpush1.msra.mxu0 0.0
    %789 = vmatprep.subr.mxu0 0.0
    %790 = vmatpush1.msra.mxu0 0.0
    %791 = vmatprep.mubr.f32.mxu0 0.0
    %792 = vmatmul.mubr.f32.gmra.mrb[0].mxu0 %v725
    %v793 = vpop.f32.mrb[0].mxu0
    %v794 = vadd.f32 0.0, %v793
    %v795 = vpop.f32.mrb[0].mxu0
    %796 = vdwg.mxu0
    %v797 = vadd.f32 %v723, %v794
    %v798 = vtanh.pop %v797
    %v799 = vld [vmem:[%s4] sm:$0xff]
    %v800 = vld [vmem:[%s4 + $0x8] sm:$0xff]
    %v801 = vld [vmem:[%s4 + $0x10] sm:$0xff]
    %v802 = vld [vmem:[%s4 + $0x18] sm:$0xff]
    %v803 = vld [vmem:[%s5] sm:$0x1]
    %v805 = vlaneseq
    %v806 = vshrl.u32 %v805, 7
    %v807 = vsub.s32 0, %v806
    %v808 = vrot.slane %v803, %v807
    %v811 = vsel %vm171, %v798, 0
    %813 = vmatprep.subr.mxu0 0.0
    %814 = vmatpush1.msra.mxu0 %v799
    %815 = vmatprep.subr.mxu0 0.0
    %816 = vmatpush1.msra.mxu0 %v800
    %817 = vmatprep.subr.mxu0 0.0
    %818 = vmatpush1.msra.mxu0 %v801
    %819 = vmatprep.subr.mxu0 0.0
    %820 = vmatpush1.msra.mxu0 %v802
    %821 = vmatprep.subr.mxu0 0.0
    %822 = vmatpush1.msra.mxu0 0.0
    %823 = vmatprep.subr.mxu0 0.0
    %824 = vmatpush1.msra.mxu0 0.0
    %825 = vmatprep.subr.mxu0 0.0
    %826 = vmatpush1.msra.mxu0 0.0
    %827 = vmatprep.subr.mxu0 0.0
    %828 = vmatpush1.msra.mxu0 0.0
    %829 = vmatprep.subr.mxu0 0.0
    %830 = vmatpush1.msra.mxu0 0.0
    %831 = vmatprep.subr.mxu0 0.0
    %832 = vmatpush1.msra.mxu0 0.0
    %833 = vmatprep.subr.mxu0 0.0
    %834 = vmatpush1.msra.mxu0 0.0
    %835 = vmatprep.subr.mxu0 0.0
    %836 = vmatpush1.msra.mxu0 0.0
    %837 = vmatprep.subr.mxu0 0.0
    %838 = vmatpush1.msra.mxu0 0.0
    %839 = vmatprep.subr.mxu0 0.0
    %840 = vmatpush1.msra.mxu0 0.0
    %841 = vmatprep.subr.mxu0 0.0
    %842 = vmatpush1.msra.mxu0 0.0
    %843 = vmatprep.subr.mxu0 0.0
    %844 = vmatpush1.msra.mxu0 0.0
    %845 = vmatprep.subr.mxu0 0.0
    %846 = vmatpush1.msra.mxu0 0.0
    %847 = vmatprep.subr.mxu0 0.0
    %848 = vmatpush1.msra.mxu0 0.0
    %849 = vmatprep.subr.mxu0 0.0
    %850 = vmatpush1.msra.mxu0 0.0
    %851 = vmatprep.subr.mxu0 0.0
    %852 = vmatpush1.msra.mxu0 0.0
    %853 = vmatprep.subr.mxu0 0.0
    %854 = vmatpush1.msra.mxu0 0.0
    %855 = vmatprep.subr.mxu0 0.0
    %856 = vmatpush1.msra.mxu0 0.0
    %857 = vmatprep.subr.mxu0 0.0
    %858 = vmatpush1.msra.mxu0 0.0
    %859 = vmatprep.subr.mxu0 0.0
    %860 = vmatpush1.msra.mxu0 0.0
    %861 = vmatprep.subr.mxu0 0.0
    %862 = vmatpush1.msra.mxu0 0.0
    %863 = vmatprep.subr.mxu0 0.0
    %864 = vmatpush1.msra.mxu0 0.0
    %865 = vmatprep.subr.mxu0 0.0
    %866 = vmatpush1.msra.mxu0 0.0
    %867 = vmatprep.subr.mxu0 0.0
    %868 = vmatpush1.msra.mxu0 0.0
    %869 = vmatprep.subr.mxu0 0.0
    %870 = vmatpush1.msra.mxu0 0.0
    %871 = vmatprep.subr.mxu0 0.0
    %872 = vmatpush1.msra.mxu0 0.0
    %873 = vmatprep.subr.mxu0 0.0
    %874 = vmatpush1.msra.mxu0 0.0
    %875 = vmatprep.subr.mxu0 0.0
    %876 = vmatpush1.msra.mxu0 0.0
    %877 = vmatprep.mubr.f32.mxu0 0.0
    %878 = vmatmul.mubr.f32.gmra.mrb[0].mxu0 %v811
    %v879 = vpop.f32.mrb[0].mxu0
    %v880 = vadd.f32 %v808, %v879
    %v881 = vpop.f32.mrb[0].mxu0
    %882 = vdwg.mxu0
    %883 = vst [vmem:[#allocation3] sm:$0xff] %v880
    // Predicated region
    $region26: #{tpu_custom_call.1} parent=1 // pred_check
      _
    $region27: #{tpu_custom_call.1} parent=1 // pred_check_branch
      %885 = sbr.rel (0) target = $region29
    $region28: #{tpu_custom_call.1} parent=1 // pred_region
      %s887 = ssub.s32 128, 128
      %888 = vsyncadd [#allocation4], %s887
      %s890 = sshll.u32 [#allocation3], 4
      %s891 = int_to_ptr.vmem [resolvable:$true] %s890
      %893 = dma.vmem_to_hbm [thread:$0]  %s891, 128, %s6, [#allocation4]
    $region29: #{tpu_custom_call.1} parent=1 // pred_fallthru
      _
    // Predicated region
    $region30: #{tpu_custom_call.1} parent=1 // pred_check
      _
    $region31: #{tpu_custom_call.1} parent=1 // pred_check_branch
      %895 = sbr.rel (0) target = $region33
    $region32: #{tpu_custom_call.1} parent=1 // pred_region
      %896 = dma.done [#allocation4], 128
    $region33: #{tpu_custom_call.1} parent=1 // pred_fallthru
      _
    %897 = vsyncpa [#allocation4], 1

</llo_original>
